<compile_context>
chip_gen: v6e
topology: v6e:2x2x1
jax: 0.10.0
libtpu: 0.0.40
codegen_flags: <defaults>
</compile_context>

<pallas_src>
import functools
import math

import jax
import jax.numpy as jnp
from jax.experimental import pallas as pl
from jax.experimental.pallas import tpu as pltpu


def _round_up(v, m):
    return ((v + m - 1) // m) * m


# ---------------------------------------------------------------------------
# Stage 1: h = x @ W_pad + b_pad (f32 math -> bf16 store, lane padded; padding
# column D is a constant 1.0 via the bias), e128 = h @ att_pad (lane-dense,
# only columns 0/1 are meaningful).
# ---------------------------------------------------------------------------
def _linear_att_kernel(x_ref, w_ref, b_ref, att_ref, h_ref, e_ref):
    h = jnp.dot(x_ref[...], w_ref[...], preferred_element_type=jnp.float32) + b_ref[...]
    e_ref[...] = jnp.dot(h, att_ref[...], preferred_element_type=jnp.float32)
    h_ref[...] = h.astype(h_ref.dtype)


# ---------------------------------------------------------------------------
# Stage 2: block-sparse masked softmax + aggregation.
#   grid = (row blocks "parallel", compacted non-empty source blocks "arbitrary")
#   p[i,j] = exp(LeakyReLU(e_tar[i]+e_src[j]) - m_i) on edges (incl. diagonal), else 0
#   o[i]  += p @ h          (column D of h is 1.0 -> o[:, D] is the denominator)
#   finalize: o *= 1 / o[:, D]
# ---------------------------------------------------------------------------
def _attn_agg_kernel(cnt_ref, ids_ref, e_tar_ref, m_ref, e_src_ref, adj_ref, h_ref,
                     o_ref, *, negative_slope, block_m, block_s, max_cnt, ones_col,
                     h_resident):
    i = pl.program_id(0)
    s = pl.program_id(1)

    @pl.when(s == 0)
    def _init():
        o_ref[...] = jnp.zeros_like(o_ref)

    @pl.when(s < cnt_ref[i])
    def _compute():
        blk = ids_ref[i * max_cnt + s]                         # global source-block index

        # logits + LeakyReLU (2 VPU passes: mul + max)
        z = e_tar_ref[...] + e_src_ref[...]                    # [block_m, block_s]
        z = jnp.maximum(z, negative_slope * z)

        # adjacency OR the always-present self edge (diagonal), computed in-kernel
        r = jax.lax.broadcasted_iota(jnp.int32, (block_m, block_s), 0)
        c = jax.lax.broadcasted_iota(jnp.int32, (block_m, block_s), 1)
        diag = (r + i * block_m) == (c + blk * block_s)
        mask = (adj_ref[...] != 0) | diag

        # m is a per-row upper bound over ALL sources, so exp(z - m) <= 1 everywhere.
        p = jnp.where(mask, jnp.exp(z - m_ref[...]), 0.0)

        if h_resident:
            start = pl.multiple_of(blk * block_s, block_s)
            h_blk = h_ref[pl.ds(start, block_s), :]
        else:
            h_blk = h_ref[...]

        o_ref[...] += jnp.dot(p.astype(jnp.bfloat16), h_blk,
                              preferred_element_type=jnp.float32)

    @pl.when(s == pl.num_programs(1) - 1)
    def _finalize():
        acc = o_ref[...]
        inv_l = pl.reciprocal(acc[:, ones_col:ones_col + 1], approx=True)
        o_ref[...] = acc * inv_l


def gar_gat_conv(x, W, b, att, adj, *, negative_slope=0.2, block_m=512, block_s=512):
    """garGATConv forward.

    x: [N, F_in] f32, W: [D, F_in] f32, b: [D] f32, att: [D, 2] f32,
    adj: [N, N] int8 adjacency mask adj[target, source] (self edges are added
    unconditionally on the diagonal by the kernel, matching the module's alpha_self).
    Returns [N, D] f32 with D = heads * out_channels (concat=True).
    """
    N, f_in = x.shape
    D = W.shape[0]
    # One spare padding lane (column D) carries a constant 1.0 so the aggregation matmul
    # also produces the softmax denominator.
    D_pad = _round_up(D + 1, 128)
    ones_col = D

    block_m = min(block_m, N)
    block_s = min(block_s, N)
    assert N % block_m == 0 and N % block_s == 0, "N must be divisible by the tile sizes"
    # TODO(synk): no padding/masking path for general N.

    adj = adj.astype(jnp.int8)

    # Zero-pad parameters on the feature axis: padded h columns are 0 except column D
    # which is forced to 1.0 through the padded bias; padded att rows contribute nothing.
    w_pad = jnp.zeros((f_in, D_pad), jnp.float32).at[:, :D].set(W.T)
    b_pad = jnp.zeros((1, D_pad), jnp.float32).at[:, :D].set(b.reshape(1, D))
    b_pad = b_pad.at[0, ones_col].set(1.0)
    att_pad = jnp.zeros((D_pad, 128), jnp.float32).at[:D, :2].set(att)

    n_rb = N // block_m
    n_sb = N // block_s

    vmem_limit = 32 * 1024 * 1024   # safe on v5e/v6e (128 MiB) and v7x (64 MiB)

    # ---- Stage 1: h (bf16, lane-padded, ones column) and lane-dense e ----
    h_bf16, e128 = pl.pallas_call(
        _linear_att_kernel,
        out_shape=(jax.ShapeDtypeStruct((N, D_pad), jnp.bfloat16),
                   jax.ShapeDtypeStruct((N, 128), jnp.float32)),
        grid_spec=pltpu.PrefetchScalarGridSpec(
            num_scalar_prefetch=0,
            grid=(n_rb,),
            in_specs=[pl.BlockSpec((block_m, f_in), lambda i: (i, 0)),
                      pl.BlockSpec((f_in, D_pad), lambda i: (0, 0)),
                      pl.BlockSpec((1, D_pad), lambda i: (0, 0)),
                      pl.BlockSpec((D_pad, 128), lambda i: (0, 0))],
            out_specs=[pl.BlockSpec((block_m, D_pad), lambda i: (i, 0)),
                       pl.BlockSpec((block_m, 128), lambda i: (i, 0))]),
        compiler_params=pltpu.CompilerParams(
            dimension_semantics=("parallel",),
            vmem_limit_bytes=vmem_limit),
    )(x, w_pad, b_pad, att_pad)

    e_tar = e128[:, 0:1]                                   # [N, 1] target-side scalar
    e_src_row = e128[:, 1].reshape(1, N)                   # [1, N] source-side scalar
    # Per-row numerical-stability bound m_i = LeakyReLU(e_tar[i] + max_j e_src[j]);
    # LeakyReLU is monotone so exp(logit - m_i) <= 1 for every source.
    gmax = jnp.max(e128[:, 1])
    m_row = e_tar + gmax
    m_row = jnp.maximum(m_row, negative_slope * m_row)     # [N, 1]

    # ---- Block-sparse structure: skip empty adjacency tiles ----
    blk_nonzero = jnp.any(adj.reshape(n_rb, block_m, n_sb, block_s) != 0, axis=(1, 3))
    rb_lo = jnp.arange(n_rb) * block_m
    sb_lo = jnp.arange(n_sb) * block_s
    diag_blk = (rb_lo[:, None] < sb_lo[None, :] + block_s) & \
               (sb_lo[None, :] < rb_lo[:, None] + block_m)     # block contains a self edge
    blk_mask = blk_nonzero | diag_blk                          # [n_rb, n_sb]
    counts = jnp.sum(blk_mask, axis=1).astype(jnp.int32)       # [n_rb], >= 1 everywhere
    # Grid bound must be static -> requires a concrete adjacency.
    # TODO(synk): under jit use max_cnt = n_sb (dense grid; compute still skipped per step).
    max_cnt = int(jnp.max(counts))
    pos = jnp.arange(n_sb, dtype=jnp.int32)[None, :]
    key = jnp.where(blk_mask, pos, pos + n_sb)   # unique keys: non-empty blocks sort first
    order = jnp.argsort(key, axis=1).astype(jnp.int32)
    last = jnp.take_along_axis(order, jnp.maximum(counts - 1, 0)[:, None], axis=1)
    ids = jnp.where(pos < counts[:, None], order, last)[:, :max_cnt]   # pad = repeat last
    ids = ids.reshape(-1)                                              # [n_rb * max_cnt]

    # Keep h fully VMEM-resident in stage 2 when it is small enough (budget also safe on
    # v7x's 64 MiB VMEM); otherwise stream it one source block at a time.
    h_resident = (N * D_pad * 2) <= (8 * 1024 * 1024)
    if h_resident:
        h_spec = pl.BlockSpec((N, D_pad), lambda i, s, cnt, idx: (0, 0))
    else:
        h_spec = pl.BlockSpec((block_s, D_pad),
                              lambda i, s, cnt, idx: (idx[i * max_cnt + s], 0))

    kernel = functools.partial(
        _attn_agg_kernel, negative_slope=negative_slope, block_m=block_m,
        block_s=block_s, max_cnt=max_cnt, ones_col=ones_col, h_resident=h_resident)

    out_pad = pl.pallas_call(
        kernel,
        out_shape=jax.ShapeDtypeStruct((N, D_pad), jnp.float32),
        grid_spec=pltpu.PrefetchScalarGridSpec(
            num_scalar_prefetch=2,
            grid=(n_rb, max_cnt),
            in_specs=[pl.BlockSpec((block_m, 1), lambda i, s, cnt, idx: (i, 0)),
                      pl.BlockSpec((block_m, 1), lambda i, s, cnt, idx: (i, 0)),
                      pl.BlockSpec((1, block_s),
                                   lambda i, s, cnt, idx: (0, idx[i * max_cnt + s])),
                      pl.BlockSpec((block_m, block_s),
                                   lambda i, s, cnt, idx: (i, idx[i * max_cnt + s])),
                      h_spec],
            out_specs=pl.BlockSpec((block_m, D_pad), lambda i, s, cnt, idx: (i, 0))),
        compiler_params=pltpu.CompilerParams(
            dimension_semantics=("parallel", "arbitrary"),
            vmem_limit_bytes=vmem_limit),
    )(counts, ids, e_tar, m_row, e_src_row, adj, h_bf16)

    return out_pad[:, :D]


def _reference(x, W, b, att, adj, negative_slope):
    h = x @ W.T + b.reshape(1, -1)
    e = h @ att
    z = e[:, 0:1] + e[:, 1][None, :]
    z = jnp.where(z >= 0.0, z, negative_slope * z)
    mask = (adj != 0) | jnp.eye(adj.shape[0], dtype=bool)   # self edge always included
    z = jnp.where(mask, z, -jnp.inf)
    alpha = jax.nn.softmax(z, axis=-1)
    alpha = jnp.where(mask, alpha, 0.0)
    return alpha @ h


if __name__ == "__main__":
    # Small shapes consistent with the module: N nodes, in_channels, heads*out_channels.
    N = 1024
    in_channels = 16
    heads = 2
    out_channels = 8
    D = heads * out_channels               # concat=True -> output feature dim
    negative_slope = 0.2
    block = 256                            # stage-2 tile (default is 512)

    key = jax.random.PRNGKey(0)
    kx, kw, kb, ka = jax.random.split(key, 4)

    x = jax.random.normal(kx, (N, in_channels), dtype=jnp.float32)

    # Parameter init matching the module's __init__ shapes:
    #   dense.weight [D, in_channels] glorot, dense.bias [D], att [D, 2] glorot.
    stdv_w = math.sqrt(6.0 / (in_channels + D))
    W = jax.random.uniform(kw, (D, in_channels), minval=-stdv_w, maxval=stdv_w,
                           dtype=jnp.float32)
    bound_b = 1.0 / math.sqrt(in_channels)
    b = jax.random.uniform(kb, (D,), minval=-bound_b, maxval=bound_b, dtype=jnp.float32)
    stdv_a = math.sqrt(6.0 / (D + 2))
    att = jax.random.uniform(ka, (D, 2), minval=-stdv_a, maxval=stdv_a, dtype=jnp.float32)

    # Edge list (flow='target_to_source'): K-regular ring plus a few long-range edges from
    # node 0 so that row blocks have different numbers of non-empty source blocks (this
    # exercises the block-sparse skip path).
    K = 4
    tar = jnp.repeat(jnp.arange(N, dtype=jnp.int32), K)
    src = (tar + jnp.tile(jnp.arange(1, K + 1, dtype=jnp.int32), N)) % N
    extra_src = jnp.arange(N // block, dtype=jnp.int32) * block + 7
    extra_tar = jnp.zeros_like(extra_src)
    tar = jnp.concatenate([tar, extra_tar])
    src = jnp.concatenate([src, extra_src])

    # Dense int8 adjacency mask adj[target, source]; self edges added in-kernel.
    adj = jnp.zeros((N, N), jnp.int8).at[tar, src].set(1)

    out = gar_gat_conv(x, W, b, att, adj, negative_slope=negative_slope,
                       block_m=block, block_s=block)
    out = jax.block_until_ready(out)

    ref = _reference(x, W, b, att, adj, negative_slope)
    assert out.shape == (N, D)
    # bf16 h / bf16 alpha in the aggregation matmul + approx reciprocal -> relaxed tol.
    err = float(jnp.max(jnp.abs(out - ref)))
    assert jnp.allclose(out, ref, rtol=2e-2, atol=2e-2), err

    print("KERNEL_OK")
</pallas_src>

<mosaic_0001>
module attributes {stable_mosaic.version = 11 : i64} {
  func.func @_linear_att_kernel(%arg0: i32, %arg1: memref<256x16xf32, #tpu.memory_space<vmem>>, %arg2: memref<16x128xf32, #tpu.memory_space<vmem>>, %arg3: memref<1x128xf32, #tpu.memory_space<vmem>>, %arg4: memref<128x128xf32, #tpu.memory_space<vmem>>, %arg5: memref<256x128xbf16, #tpu.memory_space<vmem>>, %arg6: memref<256x128xf32, #tpu.memory_space<vmem>>) attributes {dimension_semantics = [#tpu.dimension_semantics<parallel>], iteration_bounds = array<i64: 4>, scalar_prefetch = 0 : i64, scratch_operands = 0 : i64, tpu.core_type = #tpu.core_type<tc>, window_params = [{transform_indices = @transform_0, window_bounds = array<i64: 256, 16>}, {pipeline_mode = #tpu.pipeline_mode<synchronous>, transform_indices = @transform_1, window_bounds = array<i64: 16, 128>}, {pipeline_mode = #tpu.pipeline_mode<synchronous>, transform_indices = @transform_2, window_bounds = array<i64: 1, 128>}, {pipeline_mode = #tpu.pipeline_mode<synchronous>, transform_indices = @transform_3, window_bounds = array<i64: 128, 128>}, {transform_indices = @transform_4, window_bounds = array<i64: 256, 128>}, {transform_indices = @transform_5, window_bounds = array<i64: 256, 128>}]} {
    %c0 = arith.constant 0 : index
    %c0_0 = arith.constant 0 : index
    %0 = vector.load %arg1[%c0, %c0_0] : memref<256x16xf32, #tpu.memory_space<vmem>>, vector<256x16xf32>
    %c0_1 = arith.constant 0 : index
    %c0_2 = arith.constant 0 : index
    %1 = vector.load %arg2[%c0_1, %c0_2] : memref<16x128xf32, #tpu.memory_space<vmem>>, vector<16x128xf32>
    %cst = arith.constant dense<0.000000e+00> : vector<256x128xf32>
    %2 = tpu.matmul %0, %1, %cst {dimension_numbers = #tpu.dot_dimension_numbers<[1], [0], [0], [1], [0, 0, 1, 1], [], []>} : vector<256x16xf32>, vector<16x128xf32>, vector<256x128xf32> -> vector<256x128xf32>
    %c0_3 = arith.constant 0 : index
    %c0_4 = arith.constant 0 : index
    %3 = vector.load %arg3[%c0_3, %c0_4] : memref<1x128xf32, #tpu.memory_space<vmem>>, vector<1x128xf32>
    %4 = vector.broadcast %3 : vector<1x128xf32> to vector<256x128xf32>
    %5 = arith.addf %2, %4 : vector<256x128xf32>
    %c0_5 = arith.constant 0 : index
    %c0_6 = arith.constant 0 : index
    %6 = vector.load %arg4[%c0_5, %c0_6] : memref<128x128xf32, #tpu.memory_space<vmem>>, vector<128x128xf32>
    %cst_7 = arith.constant dense<0.000000e+00> : vector<256x128xf32>
    %7 = tpu.matmul %5, %6, %cst_7 {dimension_numbers = #tpu.dot_dimension_numbers<[1], [0], [0], [1], [0, 0, 1, 1], [], []>} : vector<256x128xf32>, vector<128x128xf32>, vector<256x128xf32> -> vector<256x128xf32>
    %c0_8 = arith.constant 0 : index
    %c0_9 = arith.constant 0 : index
    %8 = vector.load %arg6[%c0_8, %c0_9] : memref<256x128xf32, #tpu.memory_space<vmem>>, vector<256x128xf32>
    tpu.vector_store %arg6[%c0_8, %c0_9], %7 {strides = array<i32>} : memref<256x128xf32, #tpu.memory_space<vmem>>, vector<256x128xf32>,
    %9 = arith.truncf %5 : vector<256x128xf32> to vector<256x128xbf16>
    %c0_10 = arith.constant 0 : index
    %c0_11 = arith.constant 0 : index
    %10 = vector.load %arg5[%c0_10, %c0_11] : memref<256x128xbf16, #tpu.memory_space<vmem>>, vector<256x128xbf16>
    tpu.vector_store %arg5[%c0_10, %c0_11], %9 {strides = array<i32>} : memref<256x128xbf16, #tpu.memory_space<vmem>>, vector<256x128xbf16>,
    return
  }
  func.func @transform_0(%arg0: i32) -> (i32, i32) {
    %c0_i32 = arith.constant 0 : i32
    %c0_i32_0 = arith.constant 0 : i32
    return %arg0, %c0_i32 : i32, i32
  }
  func.func @transform_1(%arg0: i32) -> (i32, i32) {
    %c0_i32 = arith.constant 0 : i32
    %c0_i32_0 = arith.constant 0 : i32
    %c0_i32_1 = arith.constant 0 : i32
    return %c0_i32, %c0_i32_0 : i32, i32
  }
  func.func @transform_2(%arg0: i32) -> (i32, i32) {
    %c0_i32 = arith.constant 0 : i32
    %c0_i32_0 = arith.constant 0 : i32
    %c0_i32_1 = arith.constant 0 : i32
    return %c0_i32, %c0_i32_0 : i32, i32
  }
  func.func @transform_3(%arg0: i32) -> (i32, i32) {
    %c0_i32 = arith.constant 0 : i32
    %c0_i32_0 = arith.constant 0 : i32
    %c0_i32_1 = arith.constant 0 : i32
    return %c0_i32, %c0_i32_0 : i32, i32
  }
  func.func @transform_4(%arg0: i32) -> (i32, i32) {
    %c0_i32 = arith.constant 0 : i32
    %c0_i32_0 = arith.constant 0 : i32
    return %arg0, %c0_i32 : i32, i32
  }
  func.func @transform_5(%arg0: i32) -> (i32, i32) {
    %c0_i32 = arith.constant 0 : i32
    %c0_i32_0 = arith.constant 0 : i32
    return %arg0, %c0_i32 : i32, i32
  }
}

</mosaic_0001>

<llo_original>
// kernel: tpu_custom_call.1
$region0: #{tpu_custom_call.1}
  #allocation0 [shape = 'u32[]', space=smem, size = 0x4, offset = 0x4, fixed_abs, tag = 'smem constant byte address 0x4 - core index']
  #allocation1 [shape = 'u32[144,128]{1,0:T(1,128)}', space=vmem, size = 0x12000, scoped, tag = 'internal scratch']
  %s0 = inlined_call_operand.vmem [shape: f32[1024,16], index: 0, kind: input, shape index: {}]
  %s1 = inlined_call_operand.vmem [shape: f32[16,128], index: 1, kind: input, shape index: {}]
  %s2 = inlined_call_operand.vmem [shape: f32[1,128], index: 2, kind: input, shape index: {}]
  %s3 = inlined_call_operand.vmem [shape: f32[128,128], index: 3, kind: input, shape index: {}]
  %s4 = inlined_call_operand.hbm [shape: bf16[1024,128], index: 4, kind: output, shape index: {0}]
  %s5 = inlined_call_operand.hbm [shape: f32[1024,128], index: 5, kind: output, shape index: {1}]
  %6 = xla_tuple %s4, %s5
  %s7 = sld [smem:[#allocation0]]
  $region57: #{tpu_custom_call.1} parent=0
    _
  %s9 = ssub.s32 1, %s7
  %s10 = scalar_select 0, %s9, %s7
  $region1: #{tpu_custom_call.1} parent=0
    #allocation2 [shape = 'u8[131072]{0}', space=vmem, size = 0x20000, scoped, tag = 'output window, operand 0']
    #allocation3 [shape = 's32[2]{0}', space=sflag, size = 0x8, scoped, tag = 'scoped memory for tpu_custom_call.1']
    #allocation4 [shape = 'u8[262144]{0}', space=vmem, size = 0x40000, scoped, tag = 'output window, operand 1']
    #allocation5 [shape = 's32[2]{0}', space=sflag, size = 0x8, scoped, tag = 'scoped memory for tpu_custom_call.1']
    %11 = vsyncpa [#allocation3], 0
    %s12 = scalar_lea.sflag [#allocation3], 1
    %13 = vsyncpa %s12, 0
    %14 = vsyncpa [#allocation5], 0
    %s15 = scalar_lea.sflag [#allocation5], 1
    %16 = vsyncpa %s15, 0
    loop: start=0, step=1, limit=6
    $region2: #{tpu_custom_call.1} parent=1 // loop_pre_header
      _
    $region3: #{tpu_custom_call.1} parent=1 // loop_header
      %s18 = sphi 0, %s22
      %p19 = scmp.ge.s32.totalorder %s18, 6
      %s28 = sphi 0, %s30
      %s31 = sphi 0, %s28
      %s32 = sphi 0, %s31
      %s48 = sphi 0, %s32
      %s52 = sphi 0, %s52
      %s54 = sphi 0, %s52
      %s55 = sphi 0, %s54
      %s69 = sphi 0, %s55
      %s73 = sphi 0, %s73
      %s75 = sphi 0, %s73
      %s76 = sphi 0, %s75
      %s90 = sphi 0, %s76
      %s94 = sphi 0, %s94
      %s96 = sphi 0, %s94
      %s97 = sphi 0, %s96
      %s111 = sphi 0, %s97
      %s117 = sphi 0, %s119
      %s120 = sphi 0, %s117
      %s121 = sphi 0, %s120
      %s137 = sphi 0, %s121
      %s143 = sphi 0, %s145
      %s146 = sphi 0, %s143
      %s147 = sphi 0, %s146
      %s163 = sphi 0, %s147
    $region4: #{tpu_custom_call.1} parent=1 // loop_header_branch
      %21 = sbr.rel (%p19) target = $region8
    $region5: #{tpu_custom_call.1} parent=1 // loop_body
      %s23 = ssub.s32 %s18, 1
      %s24 = ssub.s32 %s18, 2
      %s25 = sadd.s32 %s18, 1
      %s26 = ssub.s32 %s18, %s25
      %p27 = scmp.eq.s32.totalorder %s26, 0
      %s29 = sadd.s32 %s28, 1
      %s30 = scalar_select %p27, %s28, %s29
      %p33 = pneg %p27
      %p34 = scmp.eq.s32.totalorder %s18, 3
      %p35 = por %p33, %p34
      %p36 = scmp.ne.s32.totalorder %s28, %s31
      %p37 = scmp.eq.s32.totalorder %s18, 0
      %p38 = por %p36, %p37
      %p39 = scmp.ne.s32.totalorder %s28, %s31
      %p40 = scmp.eq.s32.totalorder %s23, 3
      %p41 = por %p39, %p40
      %p42 = scmp.ne.s32.totalorder %s31, %s32
      %p43 = scmp.eq.s32.totalorder %s23, 0
      %p44 = por %p42, %p43
      %p45 = scmp.ne.s32.totalorder %s31, %s32
      %p46 = scmp.eq.s32.totalorder %s24, 3
      %p47 = por %p45, %p46
      %p49 = scmp.ne.s32.totalorder %s32, %s48
      %p50 = scmp.eq.s32.totalorder %s24, 0
      %p51 = por %p49, %p50
      %s53 = sadd.s32 %s52, 1
      %p56 = scmp.eq.s32.totalorder %s18, 3
      %p57 = scmp.ne.s32.totalorder %s52, %s54
      %p58 = scmp.eq.s32.totalorder %s18, 0
      %p59 = por %p57, %p58
      %p60 = scmp.ne.s32.totalorder %s52, %s54
      %p61 = scmp.eq.s32.totalorder %s23, 3
      %p62 = por %p60, %p61
      %p63 = scmp.ne.s32.totalorder %s54, %s55
      %p64 = scmp.eq.s32.totalorder %s23, 0
      %p65 = por %p63, %p64
      %p66 = scmp.ne.s32.totalorder %s54, %s55
      %p67 = scmp.eq.s32.totalorder %s24, 3
      %p68 = por %p66, %p67
      %p70 = scmp.ne.s32.totalorder %s55, %s69
      %p71 = scmp.eq.s32.totalorder %s24, 0
      %p72 = por %p70, %p71
      %s74 = sadd.s32 %s73, 1
      %p77 = scmp.eq.s32.totalorder %s18, 3
      %p78 = scmp.ne.s32.totalorder %s73, %s75
      %p79 = scmp.eq.s32.totalorder %s18, 0
      %p80 = por %p78, %p79
      %p81 = scmp.ne.s32.totalorder %s73, %s75
      %p82 = scmp.eq.s32.totalorder %s23, 3
      %p83 = por %p81, %p82
      %p84 = scmp.ne.s32.totalorder %s75, %s76
      %p85 = scmp.eq.s32.totalorder %s23, 0
      %p86 = por %p84, %p85
      %p87 = scmp.ne.s32.totalorder %s75, %s76
      %p88 = scmp.eq.s32.totalorder %s24, 3
      %p89 = por %p87, %p88
      %p91 = scmp.ne.s32.totalorder %s76, %s90
      %p92 = scmp.eq.s32.totalorder %s24, 0
      %p93 = por %p91, %p92
      %s95 = sadd.s32 %s94, 1
      %p98 = scmp.eq.s32.totalorder %s18, 3
      %p99 = scmp.ne.s32.totalorder %s94, %s96
      %p100 = scmp.eq.s32.totalorder %s18, 0
      %p101 = por %p99, %p100
      %p102 = scmp.ne.s32.totalorder %s94, %s96
      %p103 = scmp.eq.s32.totalorder %s23, 3
      %p104 = por %p102, %p103
      %p105 = scmp.ne.s32.totalorder %s96, %s97
      %p106 = scmp.eq.s32.totalorder %s23, 0
      %p107 = por %p105, %p106
      %p108 = scmp.ne.s32.totalorder %s96, %s97
      %p109 = scmp.eq.s32.totalorder %s24, 3
      %p110 = por %p108, %p109
      %p112 = scmp.ne.s32.totalorder %s97, %s111
      %p113 = scmp.eq.s32.totalorder %s24, 0
      %p114 = por %p112, %p113
      %s115 = ssub.s32 %s18, %s25
      %p116 = scmp.eq.s32.totalorder %s115, 0
      %s118 = sadd.s32 %s117, 1
      %s119 = scalar_select %p116, %s117, %s118
      %p122 = pneg %p116
      %p123 = scmp.eq.s32.totalorder %s18, 3
      %p124 = por %p122, %p123
      %p125 = scmp.ne.s32.totalorder %s117, %s120
      %p126 = scmp.eq.s32.totalorder %s18, 0
      %p127 = por %p125, %p126
      %p128 = scmp.ne.s32.totalorder %s117, %s120
      %p129 = scmp.eq.s32.totalorder %s23, 3
      %p130 = por %p128, %p129
      %p131 = scmp.ne.s32.totalorder %s120, %s121
      %p132 = scmp.eq.s32.totalorder %s23, 0
      %p133 = por %p131, %p132
      %p134 = scmp.ne.s32.totalorder %s120, %s121
      %p135 = scmp.eq.s32.totalorder %s24, 3
      %p136 = por %p134, %p135
      %p138 = scmp.ne.s32.totalorder %s121, %s137
      %p139 = scmp.eq.s32.totalorder %s24, 0
      %p140 = por %p138, %p139
      %s141 = ssub.s32 %s18, %s25
      %p142 = scmp.eq.s32.totalorder %s141, 0
      %s144 = sadd.s32 %s143, 1
      %s145 = scalar_select %p142, %s143, %s144
      %p148 = pneg %p142
      %p149 = scmp.eq.s32.totalorder %s18, 3
      %p150 = por %p148, %p149
      %p151 = scmp.ne.s32.totalorder %s143, %s146
      %p152 = scmp.eq.s32.totalorder %s18, 0
      %p153 = por %p151, %p152
      %p154 = scmp.ne.s32.totalorder %s143, %s146
      %p155 = scmp.eq.s32.totalorder %s23, 3
      %p156 = por %p154, %p155
      %p157 = scmp.ne.s32.totalorder %s146, %s147
      %p158 = scmp.eq.s32.totalorder %s23, 0
      %p159 = por %p157, %p158
      %p160 = scmp.ne.s32.totalorder %s146, %s147
      %p161 = scmp.eq.s32.totalorder %s24, 3
      %p162 = por %p160, %p161
      %p164 = scmp.ne.s32.totalorder %s147, %s163
      %p165 = scmp.eq.s32.totalorder %s24, 0
      %p166 = por %p164, %p165
      %p167 = scmp.le.s32.totalorder 1, %s18
      %p168 = scmp.lt.s32.totalorder %s18, 5
      %p169 = pnand %p167, %p168
      %p170 = pneg %p169
      // Predicated region
      $region9: #{tpu_custom_call.1} parent=5 // pred_check
        _
      $region10: #{tpu_custom_call.1} parent=5 // pred_check_branch
        %172 = sbr.rel (%p169) target = $region12
      $region11: #{tpu_custom_call.1} parent=5 // pred_region
        %s173 = ssub.s32 %s18, 1
        // Predicated region
        $region13: #{tpu_custom_call.1} parent=11 // pred_check
          %p174 = pneg %p65
        $region14: #{tpu_custom_call.1} parent=11 // pred_check_branch
          %176 = sbr.rel (%p174) target = $region16
        $region15: #{tpu_custom_call.1} parent=11 // pred_region
          _
        $region16: #{tpu_custom_call.1} parent=11 // pred_fallthru
          _
        // Predicated region
        $region17: #{tpu_custom_call.1} parent=11 // pred_check
          %p177 = pneg %p86
        $region18: #{tpu_custom_call.1} parent=11 // pred_check_branch
          %179 = sbr.rel (%p177) target = $region20
        $region19: #{tpu_custom_call.1} parent=11 // pred_region
          _
        $region20: #{tpu_custom_call.1} parent=11 // pred_fallthru
          _
        // Predicated region
        $region21: #{tpu_custom_call.1} parent=11 // pred_check
          %p180 = pneg %p107
        $region22: #{tpu_custom_call.1} parent=11 // pred_check_branch
          %182 = sbr.rel (%p180) target = $region24
        $region23: #{tpu_custom_call.1} parent=11 // pred_region
          _
        $region24: #{tpu_custom_call.1} parent=11 // pred_fallthru
          _
      $region12: #{tpu_custom_call.1} parent=5 // pred_fallthru
        _
      %p183 = scmp.lt.s32.totalorder %s18, 4
      // Predicated region
      $region25: #{tpu_custom_call.1} parent=5 // pred_check
        %p184 = pneg %p183
      $region26: #{tpu_custom_call.1} parent=5 // pred_check_branch
        %186 = sbr.rel (%p184) target = $region28
      $region27: #{tpu_custom_call.1} parent=5 // pred_region
        // Predicated region
        $region29: #{tpu_custom_call.1} parent=27 // pred_check
          %p187 = pneg %p38
        $region30: #{tpu_custom_call.1} parent=27 // pred_check_branch
          %189 = sbr.rel (%p187) target = $region32
        $region31: #{tpu_custom_call.1} parent=27 // pred_region
          %s190 = smul.u32 32, %s18
          %p191 = scmp.lt.s32.totalorder %s190, 127
          %s192 = scalar_select %p191, %s190, 127
          %s193 = smul.addr %s192, 8
          %s194 = scalar_lea.vmem %s0, %s193
          %s195 = smul.u32 32, %s18
        $region32: #{tpu_custom_call.1} parent=27 // pred_fallthru
          _
      $region28: #{tpu_custom_call.1} parent=5 // pred_fallthru
        _
      %p196 = scmp.le.s32.totalorder 1, %s18
      %p197 = scmp.lt.s32.totalorder %s18, 5
      %p198 = pnand %p196, %p197
      %p199 = pneg %p198
      // Predicated region
      $region33: #{tpu_custom_call.1} parent=5 // pred_check
        _
      $region34: #{tpu_custom_call.1} parent=5 // pred_check_branch
        %201 = sbr.rel (%p198) target = $region36
      $region35: #{tpu_custom_call.1} parent=5 // pred_region
        %s202 = ssub.s32 %s18, 1
        %s203 = smul.u32 32, %s23
        %p204 = scmp.lt.s32.totalorder %s203, 127
        %s205 = scalar_select %p204, %s203, 127
        %s206 = smul.addr %s205, 8
        %s207 = scalar_lea.vmem %s0, %s206
        %p208 = pneg %p44
        %p209 = pneg %p41
        %p210 = pneg %p65
        %p211 = pneg %p62
        %p212 = pneg %p86
        %p213 = pneg %p83
        %p214 = pneg %p107
        %p215 = pneg %p104
        %p216 = pneg %p133
        %p217 = pneg %p130
        %s218 = sand.u32 %s120, 1
        %s219 = scalar_lea.sflag [#allocation3], %s218
        %s220 = sand.u32 %s120, 1
        %s221 = smul.addr %s220, 128
        %s222 = scalar_lea.vmem [#allocation2], %s221
        %p223 = pneg %p159
        %p224 = pneg %p156
        %s225 = sand.u32 %s146, 1
        %s226 = scalar_lea.sflag [#allocation5], %s225
        %s227 = sand.u32 %s146, 1
        %s228 = smul.addr %s227, 256
        %s229 = scalar_lea.vmem [#allocation4], %s228
        %s230 = smul.u32 32, %s23
        %p231 = scmp.lt.s32.totalorder %s230, 127
        %s232 = scalar_select %p231, %s230, 127
        %s233 = smul.addr %s232, 8
        %s234 = scalar_lea.vmem %s0, %s233
        %s235 = smul.u32 32, %s23
        %s236 = smul.u32 32, %s23
        %s237 = smul.u32 32, %s23
        %v238 = vld [vmem:[%s234] sm:$0xff]
        %v239 = vld [vmem:[%s234 + $0x8] sm:$0xff]
        %v240 = vld [vmem:[%s234 + $0x10] sm:$0xff]
        %v241 = vld [vmem:[%s234 + $0x18] sm:$0xff]
        %v242 = vld [vmem:[%s234 + $0x20] sm:$0xff]
        %v243 = vld [vmem:[%s234 + $0x28] sm:$0xff]
        %v244 = vld [vmem:[%s234 + $0x30] sm:$0xff]
        %v245 = vld [vmem:[%s234 + $0x38] sm:$0xff]
        %v246 = vld [vmem:[%s234 + $0x40] sm:$0xff]
        %v247 = vld [vmem:[%s234 + $0x48] sm:$0xff]
        %v248 = vld [vmem:[%s234 + $0x50] sm:$0xff]
        %v249 = vld [vmem:[%s234 + $0x58] sm:$0xff]
        %v250 = vld [vmem:[%s234 + $0x60] sm:$0xff]
        %v251 = vld [vmem:[%s234 + $0x68] sm:$0xff]
        %v252 = vld [vmem:[%s234 + $0x70] sm:$0xff]
        %v253 = vld [vmem:[%s234 + $0x78] sm:$0xff]
        %v254 = vld [vmem:[%s234 + $0x80] sm:$0xff]
        %v255 = vld [vmem:[%s234 + $0x88] sm:$0xff]
        %v256 = vld [vmem:[%s234 + $0x90] sm:$0xff]
        %v257 = vld [vmem:[%s234 + $0x98] sm:$0xff]
        %v258 = vld [vmem:[%s234 + $0xa0] sm:$0xff]
        %v259 = vld [vmem:[%s234 + $0xa8] sm:$0xff]
        %v260 = vld [vmem:[%s234 + $0xb0] sm:$0xff]
        %v261 = vld [vmem:[%s234 + $0xb8] sm:$0xff]
        %v262 = vld [vmem:[%s234 + $0xc0] sm:$0xff]
        %v263 = vld [vmem:[%s234 + $0xc8] sm:$0xff]
        %v264 = vld [vmem:[%s234 + $0xd0] sm:$0xff]
        %v265 = vld [vmem:[%s234 + $0xd8] sm:$0xff]
        %v266 = vld [vmem:[%s234 + $0xe0] sm:$0xff]
        %v267 = vld [vmem:[%s234 + $0xe8] sm:$0xff]
        %v268 = vld [vmem:[%s234 + $0xf0] sm:$0xff]
        %v269 = vld [vmem:[%s234 + $0xf8] sm:$0xff]
        %v270 = vld [vmem:[%s1] sm:$0xff]
        %v271 = vld [vmem:[%s1 + $0x8] sm:$0xff]
        %v272 = vld [vmem:[%s2] sm:$0x1]
        %v274 = vlaneseq
        %v275 = vshrl.u32 %v274, 7
        %v276 = vsub.s32 0, %v275
        %v277 = vrot.slane %v272, %v276
        %vm279 = vcmask 130048
        %v281 = vsel %vm279, %v238, 0
        %v284 = vsel %vm279, %v239, 0
        %v287 = vsel %vm279, %v240, 0
        %v290 = vsel %vm279, %v241, 0
        %v293 = vsel %vm279, %v242, 0
        %v296 = vsel %vm279, %v243, 0
        %v299 = vsel %vm279, %v244, 0
        %v302 = vsel %vm279, %v245, 0
        %v305 = vsel %vm279, %v246, 0
        %v308 = vsel %vm279, %v247, 0
        %v311 = vsel %vm279, %v248, 0
        %v314 = vsel %vm279, %v249, 0
        %v317 = vsel %vm279, %v250, 0
        %v320 = vsel %vm279, %v251, 0
        %v323 = vsel %vm279, %v252, 0
        %v326 = vsel %vm279, %v253, 0
        %v329 = vsel %vm279, %v254, 0
        %v332 = vsel %vm279, %v255, 0
        %v335 = vsel %vm279, %v256, 0
        %v338 = vsel %vm279, %v257, 0
        %v341 = vsel %vm279, %v258, 0
        %v344 = vsel %vm279, %v259, 0
        %v347 = vsel %vm279, %v260, 0
        %v350 = vsel %vm279, %v261, 0
        %v353 = vsel %vm279, %v262, 0
        %v356 = vsel %vm279, %v263, 0
        %v359 = vsel %vm279, %v264, 0
        %v362 = vsel %vm279, %v265, 0
        %v365 = vsel %vm279, %v266, 0
        %v368 = vsel %vm279, %v267, 0
        %v371 = vsel %vm279, %v268, 0
        %v374 = vsel %vm279, %v269, 0
        %376 = vmatprep.subr.mxu0 0.0
        %377 = vmatpush1.msra.mxu0 0.0
        %378 = vmatprep.subr.mxu0 0.0
        %379 = vmatpush1.msra.mxu0 0.0
        %380 = vmatprep.subr.mxu0 0.0
        %381 = vmatpush1.msra.mxu0 0.0
        %382 = vmatprep.subr.mxu0 0.0
        %383 = vmatpush1.msra.mxu0 0.0
        %384 = vmatprep.subr.mxu0 0.0
        %385 = vmatpush1.msra.mxu0 0.0
        %386 = vmatprep.subr.mxu0 0.0
        %387 = vmatpush1.msra.mxu0 0.0
        %388 = vmatprep.subr.mxu0 0.0
        %389 = vmatpush1.msra.mxu0 0.0
        %390 = vmatprep.subr.mxu0 0.0
        %391 = vmatpush1.msra.mxu0 0.0
        %392 = vmatprep.subr.mxu0 0.0
        %393 = vmatpush1.msra.mxu0 0.0
        %394 = vmatprep.subr.mxu0 0.0
        %395 = vmatpush1.msra.mxu0 0.0
        %396 = vmatprep.subr.mxu0 0.0
        %397 = vmatpush1.msra.mxu0 0.0
        %398 = vmatprep.subr.mxu0 0.0
        %399 = vmatpush1.msra.mxu0 0.0
        %400 = vmatprep.subr.mxu0 0.0
        %401 = vmatpush1.msra.mxu0 0.0
        %402 = vmatprep.subr.mxu0 0.0
        %403 = vmatpush1.msra.mxu0 0.0
        %404 = vmatprep.subr.mxu0 0.0
        %405 = vmatpush1.msra.mxu0 %v271
        %406 = vmatprep.subr.mxu0 0.0
        %407 = vmatpush1.msra.mxu0 %v270
        %408 = vmatprep.subr.mxu0 0.0
        %409 = vmatpush2.msra.mxu0 0.0
        %410 = vmatprep.subr.mxu0 0.0
        %411 = vmatpush2.msra.mxu0 0.0
        %412 = vmatprep.subr.mxu0 0.0
        %413 = vmatpush2.msra.mxu0 0.0
        %414 = vmatprep.subr.mxu0 0.0
        %415 = vmatpush2.msra.mxu0 0.0
        %416 = vmatprep.subr.mxu0 0.0
        %417 = vmatpush2.msra.mxu0 0.0
        %418 = vmatprep.subr.mxu0 0.0
        %419 = vmatpush2.msra.mxu0 0.0
        %420 = vmatprep.subr.mxu0 0.0
        %421 = vmatpush2.msra.mxu0 0.0
        %422 = vmatprep.subr.mxu0 0.0
        %423 = vmatpush2.msra.mxu0 0.0
        %424 = vmatprep.subr.mxu0 0.0
        %425 = vmatpush2.msra.mxu0 0.0
        %426 = vmatprep.subr.mxu0 0.0
        %427 = vmatpush2.msra.mxu0 0.0
        %428 = vmatprep.subr.mxu0 0.0
        %429 = vmatpush2.msra.mxu0 0.0
        %430 = vmatprep.subr.mxu0 0.0
        %431 = vmatpush2.msra.mxu0 0.0
        %432 = vmatprep.subr.mxu0 0.0
        %433 = vmatpush2.msra.mxu0 0.0
        %434 = vmatprep.subr.mxu0 0.0
        %435 = vmatpush2.msra.mxu0 0.0
        %436 = vmatprep.subr.mxu0 0.0
        %437 = vmatpush2.msra.mxu0 0.0
        %438 = vmatprep.subr.mxu0 0.0
        %439 = vmatpush2.msra.mxu0 0.0
        %440 = vmatprep.mubr.f32.mxu0 0.0
        %441 = vmatmul.mubr.f32.gmra.mxu0 %v281
        %v442 = vpop.f32.mrf.mxu0
        %v443 = vadd.f32 %v277, %v442
        %v444 = vpop.f32.mrf.mxu0
        %445 = vmatprep.mubr.f32.mxu0 0.0
        %446 = vmatmul.mubr.f32.gmra.mxu0 %v284
        %v447 = vpop.f32.mrf.mxu0
        %v448 = vadd.f32 %v277, %v447
        %v449 = vpop.f32.mrf.mxu0
        %450 = vmatprep.mubr.f32.mxu0 0.0
        %451 = vmatmul.mubr.f32.gmra.mxu0 %v287
        %v452 = vpop.f32.mrf.mxu0
        %v453 = vadd.f32 %v277, %v452
        %v454 = vpop.f32.mrf.mxu0
        %455 = vmatprep.mubr.f32.mxu0 0.0
        %456 = vmatmul.mubr.f32.gmra.mxu0 %v290
        %v457 = vpop.f32.mrf.mxu0
        %v458 = vadd.f32 %v277, %v457
        %v459 = vpop.f32.mrf.mxu0
        %460 = vmatprep.mubr.f32.mxu0 0.0
        %461 = vmatmul.mubr.f32.gmra.mxu0 %v293
        %v462 = vpop.f32.mrf.mxu0
        %v463 = vadd.f32 %v277, %v462
        %v464 = vpop.f32.mrf.mxu0
        %465 = vmatprep.mubr.f32.mxu0 0.0
        %466 = vmatmul.mubr.f32.gmra.mxu0 %v296
        %v467 = vpop.f32.mrf.mxu0
        %v468 = vadd.f32 %v277, %v467
        %v469 = vpop.f32.mrf.mxu0
        %470 = vmatprep.mubr.f32.mxu0 0.0
        %471 = vmatmul.mubr.f32.gmra.mxu0 %v299
        %v472 = vpop.f32.mrf.mxu0
        %v473 = vadd.f32 %v277, %v472
        %v474 = vpop.f32.mrf.mxu0
        %475 = vmatprep.mubr.f32.mxu0 0.0
        %476 = vmatmul.mubr.f32.gmra.mxu0 %v302
        %v477 = vpop.f32.mrf.mxu0
        %v478 = vadd.f32 %v277, %v477
        %v479 = vpop.f32.mrf.mxu0
        %480 = vmatprep.mubr.f32.mxu0 0.0
        %481 = vmatmul.mubr.f32.gmra.mxu0 %v305
        %v482 = vpop.f32.mrf.mxu0
        %v483 = vadd.f32 %v277, %v482
        %v484 = vpop.f32.mrf.mxu0
        %485 = vmatprep.mubr.f32.mxu0 0.0
        %486 = vmatmul.mubr.f32.gmra.mxu0 %v308
        %v487 = vpop.f32.mrf.mxu0
        %v488 = vadd.f32 %v277, %v487
        %v489 = vpop.f32.mrf.mxu0
        %490 = vmatprep.mubr.f32.mxu0 0.0
        %491 = vmatmul.mubr.f32.gmra.mxu0 %v311
        %v492 = vpop.f32.mrf.mxu0
        %v493 = vadd.f32 %v277, %v492
        %v494 = vpop.f32.mrf.mxu0
        %495 = vmatprep.mubr.f32.mxu0 0.0
        %496 = vmatmul.mubr.f32.gmra.mxu0 %v314
        %v497 = vpop.f32.mrf.mxu0
        %v498 = vadd.f32 %v277, %v497
        %v499 = vpop.f32.mrf.mxu0
        %500 = vmatprep.mubr.f32.mxu0 0.0
        %501 = vmatmul.mubr.f32.gmra.mxu0 %v317
        %v502 = vpop.f32.mrf.mxu0
        %v503 = vadd.f32 %v277, %v502
        %v504 = vpop.f32.mrf.mxu0
        %505 = vmatprep.mubr.f32.mxu0 0.0
        %506 = vmatmul.mubr.f32.gmra.mxu0 %v320
        %v507 = vpop.f32.mrf.mxu0
        %v508 = vadd.f32 %v277, %v507
        %v509 = vpop.f32.mrf.mxu0
        %510 = vmatprep.mubr.f32.mxu0 0.0
        %511 = vmatmul.mubr.f32.gmra.mxu0 %v323
        %v512 = vpop.f32.mrf.mxu0
        %v513 = vadd.f32 %v277, %v512
        %v514 = vpop.f32.mrf.mxu0
        %515 = vmatprep.mubr.f32.mxu0 0.0
        %516 = vmatmul.mubr.f32.gmra.mxu0 %v326
        %v517 = vpop.f32.mrf.mxu0
        %v518 = vadd.f32 %v277, %v517
        %v519 = vpop.f32.mrf.mxu0
        %520 = vmatprep.mubr.f32.mxu0 0.0
        %521 = vmatmul.mubr.f32.gmra.mxu0 %v329
        %v522 = vpop.f32.mrf.mxu0
        %v523 = vadd.f32 %v277, %v522
        %v524 = vpop.f32.mrf.mxu0
        %525 = vmatprep.mubr.f32.mxu0 0.0
        %526 = vmatmul.mubr.f32.gmra.mxu0 %v332
        %v527 = vpop.f32.mrf.mxu0
        %v528 = vadd.f32 %v277, %v527
        %v529 = vpop.f32.mrf.mxu0
        %530 = vmatprep.mubr.f32.mxu0 0.0
        %531 = vmatmul.mubr.f32.gmra.mxu0 %v335
        %v532 = vpop.f32.mrf.mxu0
        %v533 = vadd.f32 %v277, %v532
        %v534 = vpop.f32.mrf.mxu0
        %535 = vmatprep.mubr.f32.mxu0 0.0
        %536 = vmatmul.mubr.f32.gmra.mxu0 %v338
        %v537 = vpop.f32.mrf.mxu0
        %v538 = vadd.f32 %v277, %v537
        %v539 = vpop.f32.mrf.mxu0
        %540 = vmatprep.mubr.f32.mxu0 0.0
        %541 = vmatmul.mubr.f32.gmra.mxu0 %v341
        %v542 = vpop.f32.mrf.mxu0
        %v543 = vadd.f32 %v277, %v542
        %v544 = vpop.f32.mrf.mxu0
        %545 = vmatprep.mubr.f32.mxu0 0.0
        %546 = vmatmul.mubr.f32.gmra.mxu0 %v344
        %v547 = vpop.f32.mrf.mxu0
        %v548 = vadd.f32 %v277, %v547
        %v549 = vpop.f32.mrf.mxu0
        %550 = vmatprep.mubr.f32.mxu0 0.0
        %551 = vmatmul.mubr.f32.gmra.mxu0 %v347
        %v552 = vpop.f32.mrf.mxu0
        %v553 = vadd.f32 %v277, %v552
        %v554 = vpop.f32.mrf.mxu0
        %555 = vmatprep.mubr.f32.mxu0 0.0
        %556 = vmatmul.mubr.f32.gmra.mxu0 %v350
        %v557 = vpop.f32.mrf.mxu0
        %v558 = vadd.f32 %v277, %v557
        %v559 = vpop.f32.mrf.mxu0
        %560 = vmatprep.mubr.f32.mxu0 0.0
        %561 = vmatmul.mubr.f32.gmra.mxu0 %v353
        %v562 = vpop.f32.mrf.mxu0
        %v563 = vadd.f32 %v277, %v562
        %v564 = vpop.f32.mrf.mxu0
        %565 = vmatprep.mubr.f32.mxu0 0.0
        %566 = vmatmul.mubr.f32.gmra.mxu0 %v356
        %v567 = vpop.f32.mrf.mxu0
        %v568 = vadd.f32 %v277, %v567
        %v569 = vpop.f32.mrf.mxu0
        %570 = vmatprep.mubr.f32.mxu0 0.0
        %571 = vmatmul.mubr.f32.gmra.mxu0 %v359
        %v572 = vpop.f32.mrf.mxu0
        %v573 = vadd.f32 %v277, %v572
        %v574 = vpop.f32.mrf.mxu0
        %575 = vmatprep.mubr.f32.mxu0 0.0
        %576 = vmatmul.mubr.f32.gmra.mxu0 %v362
        %v577 = vpop.f32.mrf.mxu0
        %v578 = vadd.f32 %v277, %v577
        %v579 = vpop.f32.mrf.mxu0
        %580 = vmatprep.mubr.f32.mxu0 0.0
        %581 = vmatmul.mubr.f32.gmra.mxu0 %v365
        %v582 = vpop.f32.mrf.mxu0
        %v583 = vadd.f32 %v277, %v582
        %v584 = vpop.f32.mrf.mxu0
        %585 = vmatprep.mubr.f32.mxu0 0.0
        %586 = vmatmul.mubr.f32.gmra.mxu0 %v368
        %v587 = vpop.f32.mrf.mxu0
        %v588 = vadd.f32 %v277, %v587
        %v589 = vpop.f32.mrf.mxu0
        %590 = vmatprep.mubr.f32.mxu0 0.0
        %591 = vmatmul.mubr.f32.gmra.mxu0 %v371
        %v592 = vpop.f32.mrf.mxu0
        %v593 = vadd.f32 %v277, %v592
        %v594 = vpop.f32.mrf.mxu0
        %595 = vmatprep.mubr.f32.mxu0 0.0
        %596 = vmatmul.mubr.f32.gmra.mxu0 %v374
        %v597 = vpop.f32.mrf.mxu0
        %v598 = vadd.f32 %v277, %v597
        %v599 = vpop.f32.mrf.mxu0
        %600 = vdwg.mxu0
        %v601 = vld [vmem:[%s3] sm:$0xff]
        %v602 = vld [vmem:[%s3 + $0x8] sm:$0xff]
        %v603 = vld [vmem:[%s3 + $0x10] sm:$0xff]
        %v604 = vld [vmem:[%s3 + $0x18] sm:$0xff]
        %v605 = vld [vmem:[%s3 + $0x20] sm:$0xff]
        %v606 = vld [vmem:[%s3 + $0x28] sm:$0xff]
        %v607 = vld [vmem:[%s3 + $0x30] sm:$0xff]
        %v608 = vld [vmem:[%s3 + $0x38] sm:$0xff]
        %v609 = vld [vmem:[%s3 + $0x40] sm:$0xff]
        %v610 = vld [vmem:[%s3 + $0x48] sm:$0xff]
        %v611 = vld [vmem:[%s3 + $0x50] sm:$0xff]
        %v612 = vld [vmem:[%s3 + $0x58] sm:$0xff]
        %v613 = vld [vmem:[%s3 + $0x60] sm:$0xff]
        %v614 = vld [vmem:[%s3 + $0x68] sm:$0xff]
        %v615 = vld [vmem:[%s3 + $0x70] sm:$0xff]
        %v616 = vld [vmem:[%s3 + $0x78] sm:$0xff]
        %617 = vmatprep.subr.mxu0 0.0
        %618 = vmatpush1.msra.mxu0 %v616
        %619 = vmatprep.subr.mxu0 0.0
        %620 = vmatpush1.msra.mxu0 %v615
        %621 = vmatprep.subr.mxu0 0.0
        %622 = vmatpush1.msra.mxu0 %v614
        %623 = vmatprep.subr.mxu0 0.0
        %624 = vmatpush1.msra.mxu0 %v613
        %625 = vmatprep.subr.mxu0 0.0
        %626 = vmatpush1.msra.mxu0 %v612
        %627 = vmatprep.subr.mxu0 0.0
        %628 = vmatpush1.msra.mxu0 %v611
        %629 = vmatprep.subr.mxu0 0.0
        %630 = vmatpush1.msra.mxu0 %v610
        %631 = vmatprep.subr.mxu0 0.0
        %632 = vmatpush1.msra.mxu0 %v609
        %633 = vmatprep.subr.mxu0 0.0
        %634 = vmatpush1.msra.mxu0 %v608
        %635 = vmatprep.subr.mxu0 0.0
        %636 = vmatpush1.msra.mxu0 %v607
        %637 = vmatprep.subr.mxu0 0.0
        %638 = vmatpush1.msra.mxu0 %v606
        %639 = vmatprep.subr.mxu0 0.0
        %640 = vmatpush1.msra.mxu0 %v605
        %641 = vmatprep.subr.mxu0 0.0
        %642 = vmatpush1.msra.mxu0 %v604
        %643 = vmatprep.subr.mxu0 0.0
        %644 = vmatpush1.msra.mxu0 %v603
        %645 = vmatprep.subr.mxu0 0.0
        %646 = vmatpush1.msra.mxu0 %v602
        %647 = vmatprep.subr.mxu0 0.0
        %648 = vmatpush1.msra.mxu0 %v601
        %649 = vmatprep.subr.mxu0 0.0
        %650 = vmatpush2.msra.mxu0 0.0
        %651 = vmatprep.subr.mxu0 0.0
        %652 = vmatpush2.msra.mxu0 0.0
        %653 = vmatprep.subr.mxu0 0.0
        %654 = vmatpush2.msra.mxu0 0.0
        %655 = vmatprep.subr.mxu0 0.0
        %656 = vmatpush2.msra.mxu0 0.0
        %657 = vmatprep.subr.mxu0 0.0
        %658 = vmatpush2.msra.mxu0 0.0
        %659 = vmatprep.subr.mxu0 0.0
        %660 = vmatpush2.msra.mxu0 0.0
        %661 = vmatprep.subr.mxu0 0.0
        %662 = vmatpush2.msra.mxu0 0.0
        %663 = vmatprep.subr.mxu0 0.0
        %664 = vmatpush2.msra.mxu0 0.0
        %665 = vmatprep.subr.mxu0 0.0
        %666 = vmatpush2.msra.mxu0 0.0
        %667 = vmatprep.subr.mxu0 0.0
        %668 = vmatpush2.msra.mxu0 0.0
        %669 = vmatprep.subr.mxu0 0.0
        %670 = vmatpush2.msra.mxu0 0.0
        %671 = vmatprep.subr.mxu0 0.0
        %672 = vmatpush2.msra.mxu0 0.0
        %673 = vmatprep.subr.mxu0 0.0
        %674 = vmatpush2.msra.mxu0 0.0
        %675 = vmatprep.subr.mxu0 0.0
        %676 = vmatpush2.msra.mxu0 0.0
        %677 = vmatprep.subr.mxu0 0.0
        %678 = vmatpush2.msra.mxu0 0.0
        %679 = vmatprep.subr.mxu0 0.0
        %680 = vmatpush2.msra.mxu0 0.0
        %681 = vmatprep.mubr.f32.mxu0 0.0
        %682 = vmatmul.mubr.f32.gmra.mxu0 %v443
        %v683 = vpop.f32.mrf.mxu0
        %v684 = vadd.f32 0.0, %v683
        %v685 = vpop.f32.mrf.mxu0
        %686 = vmatprep.mubr.f32.mxu0 0.0
        %687 = vmatmul.mubr.f32.gmra.mxu0 %v448
        %v688 = vpop.f32.mrf.mxu0
        %v689 = vadd.f32 0.0, %v688
        %v690 = vpop.f32.mrf.mxu0
        %691 = vmatprep.mubr.f32.mxu0 0.0
        %692 = vmatmul.mubr.f32.gmra.mxu0 %v453
        %v693 = vpop.f32.mrf.mxu0
        %v694 = vadd.f32 0.0, %v693
        %v695 = vpop.f32.mrf.mxu0
        %696 = vmatprep.mubr.f32.mxu0 0.0
        %697 = vmatmul.mubr.f32.gmra.mxu0 %v458
        %v698 = vpop.f32.mrf.mxu0
        %v699 = vadd.f32 0.0, %v698
        %v700 = vpop.f32.mrf.mxu0
        %701 = vmatprep.mubr.f32.mxu0 0.0
        %702 = vmatmul.mubr.f32.gmra.mxu0 %v463
        %v703 = vpop.f32.mrf.mxu0
        %v704 = vadd.f32 0.0, %v703
        %v705 = vpop.f32.mrf.mxu0
        %706 = vmatprep.mubr.f32.mxu0 0.0
        %707 = vmatmul.mubr.f32.gmra.mxu0 %v468
        %v708 = vpop.f32.mrf.mxu0
        %v709 = vadd.f32 0.0, %v708
        %v710 = vpop.f32.mrf.mxu0
        %711 = vmatprep.mubr.f32.mxu0 0.0
        %712 = vmatmul.mubr.f32.gmra.mxu0 %v473
        %v713 = vpop.f32.mrf.mxu0
        %v714 = vadd.f32 0.0, %v713
        %v715 = vpop.f32.mrf.mxu0
        %716 = vmatprep.mubr.f32.mxu0 0.0
        %717 = vmatmul.mubr.f32.gmra.mxu0 %v478
        %v718 = vpop.f32.mrf.mxu0
        %v719 = vadd.f32 0.0, %v718
        %v720 = vpop.f32.mrf.mxu0
        %721 = vmatprep.mubr.f32.mxu0 0.0
        %722 = vmatmul.mubr.f32.gmra.mxu0 %v483
        %v723 = vpop.f32.mrf.mxu0
        %v724 = vadd.f32 0.0, %v723
        %v725 = vpop.f32.mrf.mxu0
        %726 = vmatprep.mubr.f32.mxu0 0.0
        %727 = vmatmul.mubr.f32.gmra.mxu0 %v488
        %v728 = vpop.f32.mrf.mxu0
        %v729 = vadd.f32 0.0, %v728
        %v730 = vpop.f32.mrf.mxu0
        %731 = vmatprep.mubr.f32.mxu0 0.0
        %732 = vmatmul.mubr.f32.gmra.mxu0 %v493
        %v733 = vpop.f32.mrf.mxu0
        %v734 = vadd.f32 0.0, %v733
        %v735 = vpop.f32.mrf.mxu0
        %736 = vmatprep.mubr.f32.mxu0 0.0
        %737 = vmatmul.mubr.f32.gmra.mxu0 %v498
        %v738 = vpop.f32.mrf.mxu0
        %v739 = vadd.f32 0.0, %v738
        %v740 = vpop.f32.mrf.mxu0
        %741 = vmatprep.mubr.f32.mxu0 0.0
        %742 = vmatmul.mubr.f32.gmra.mxu0 %v503
        %v743 = vpop.f32.mrf.mxu0
        %v744 = vadd.f32 0.0, %v743
        %v745 = vpop.f32.mrf.mxu0
        %746 = vmatprep.mubr.f32.mxu0 0.0
        %747 = vmatmul.mubr.f32.gmra.mxu0 %v508
        %v748 = vpop.f32.mrf.mxu0
        %v749 = vadd.f32 0.0, %v748
        %v750 = vpop.f32.mrf.mxu0
        %751 = vmatprep.mubr.f32.mxu0 0.0
        %752 = vmatmul.mubr.f32.gmra.mxu0 %v513
        %v753 = vpop.f32.mrf.mxu0
        %v754 = vadd.f32 0.0, %v753
        %v755 = vpop.f32.mrf.mxu0
        %756 = vmatprep.mubr.f32.mxu0 0.0
        %757 = vmatmul.mubr.f32.gmra.mxu0 %v518
        %v758 = vpop.f32.mrf.mxu0
        %v759 = vadd.f32 0.0, %v758
        %v760 = vpop.f32.mrf.mxu0
        %761 = vmatprep.mubr.f32.mxu0 0.0
        %762 = vmatmul.mubr.f32.gmra.mxu0 %v523
        %v763 = vpop.f32.mrf.mxu0
        %v764 = vadd.f32 0.0, %v763
        %v765 = vpop.f32.mrf.mxu0
        %766 = vmatprep.mubr.f32.mxu0 0.0
        %767 = vmatmul.mubr.f32.gmra.mxu0 %v528
        %v768 = vpop.f32.mrf.mxu0
        %v769 = vadd.f32 0.0, %v768
        %v770 = vpop.f32.mrf.mxu0
        %771 = vmatprep.mubr.f32.mxu0 0.0
        %772 = vmatmul.mubr.f32.gmra.mxu0 %v533
        %v773 = vpop.f32.mrf.mxu0
        %v774 = vadd.f32 0.0, %v773
        %v775 = vpop.f32.mrf.mxu0
        %776 = vmatprep.mubr.f32.mxu0 0.0
        %777 = vmatmul.mubr.f32.gmra.mxu0 %v538
        %v778 = vpop.f32.mrf.mxu0
        %v779 = vadd.f32 0.0, %v778
        %v780 = vpop.f32.mrf.mxu0
        %781 = vmatprep.mubr.f32.mxu0 0.0
        %782 = vmatmul.mubr.f32.gmra.mxu0 %v543
        %v783 = vpop.f32.mrf.mxu0
        %v784 = vadd.f32 0.0, %v783
        %v785 = vpop.f32.mrf.mxu0
        %786 = vmatprep.mubr.f32.mxu0 0.0
        %787 = vmatmul.mubr.f32.gmra.mxu0 %v548
        %v788 = vpop.f32.mrf.mxu0
        %v789 = vadd.f32 0.0, %v788
        %v790 = vpop.f32.mrf.mxu0
        %791 = vmatprep.mubr.f32.mxu0 0.0
        %792 = vmatmul.mubr.f32.gmra.mxu0 %v553
        %v793 = vpop.f32.mrf.mxu0
        %v794 = vadd.f32 0.0, %v793
        %v795 = vpop.f32.mrf.mxu0
        %796 = vmatprep.mubr.f32.mxu0 0.0
        %797 = vmatmul.mubr.f32.gmra.mxu0 %v558
        %v798 = vpop.f32.mrf.mxu0
        %v799 = vadd.f32 0.0, %v798
        %v800 = vpop.f32.mrf.mxu0
        %801 = vmatprep.mubr.f32.mxu0 0.0
        %802 = vmatmul.mubr.f32.gmra.mxu0 %v563
        %v803 = vpop.f32.mrf.mxu0
        %v804 = vadd.f32 0.0, %v803
        %v805 = vpop.f32.mrf.mxu0
        %806 = vmatprep.mubr.f32.mxu0 0.0
        %807 = vmatmul.mubr.f32.gmra.mxu0 %v568
        %v808 = vpop.f32.mrf.mxu0
        %v809 = vadd.f32 0.0, %v808
        %v810 = vpop.f32.mrf.mxu0
        %811 = vmatprep.mubr.f32.mxu0 0.0
        %812 = vmatmul.mubr.f32.gmra.mxu0 %v573
        %v813 = vpop.f32.mrf.mxu0
        %v814 = vadd.f32 0.0, %v813
        %v815 = vpop.f32.mrf.mxu0
        %816 = vmatprep.mubr.f32.mxu0 0.0
        %817 = vmatmul.mubr.f32.gmra.mxu0 %v578
        %v818 = vpop.f32.mrf.mxu0
        %v819 = vadd.f32 0.0, %v818
        %v820 = vpop.f32.mrf.mxu0
        %821 = vmatprep.mubr.f32.mxu0 0.0
        %822 = vmatmul.mubr.f32.gmra.mxu0 %v583
        %v823 = vpop.f32.mrf.mxu0
        %v824 = vadd.f32 0.0, %v823
        %v825 = vpop.f32.mrf.mxu0
        %826 = vmatprep.mubr.f32.mxu0 0.0
        %827 = vmatmul.mubr.f32.gmra.mxu0 %v588
        %v828 = vpop.f32.mrf.mxu0
        %v829 = vadd.f32 0.0, %v828
        %v830 = vpop.f32.mrf.mxu0
        %831 = vmatprep.mubr.f32.mxu0 0.0
        %832 = vmatmul.mubr.f32.gmra.mxu0 %v593
        %v833 = vpop.f32.mrf.mxu0
        %v834 = vadd.f32 0.0, %v833
        %v835 = vpop.f32.mrf.mxu0
        %836 = vmatprep.mubr.f32.mxu0 0.0
        %837 = vmatmul.mubr.f32.gmra.mxu0 %v598
        %v838 = vpop.f32.mrf.mxu0
        %v839 = vadd.f32 0.0, %v838
        %v840 = vpop.f32.mrf.mxu0
        %841 = vdwg.mxu0
        %842 = vst [vmem:[%s229] sm:$0xff] %v684
        %843 = vst [vmem:[%s229 + $0x8] sm:$0xff] %v689
        %844 = vst [vmem:[%s229 + $0x10] sm:$0xff] %v694
        %845 = vst [vmem:[%s229 + $0x18] sm:$0xff] %v699
        %846 = vst [vmem:[%s229 + $0x20] sm:$0xff] %v704
        %847 = vst [vmem:[%s229 + $0x28] sm:$0xff] %v709
        %848 = vst [vmem:[%s229 + $0x30] sm:$0xff] %v714
        %849 = vst [vmem:[%s229 + $0x38] sm:$0xff] %v719
        %850 = vst [vmem:[%s229 + $0x40] sm:$0xff] %v724
        %851 = vst [vmem:[%s229 + $0x48] sm:$0xff] %v729
        %852 = vst [vmem:[%s229 + $0x50] sm:$0xff] %v734
        %853 = vst [vmem:[%s229 + $0x58] sm:$0xff] %v739
        %854 = vst [vmem:[%s229 + $0x60] sm:$0xff] %v744
        %855 = vst [vmem:[%s229 + $0x68] sm:$0xff] %v749
        %856 = vst [vmem:[%s229 + $0x70] sm:$0xff] %v754
        %857 = vst [vmem:[%s229 + $0x78] sm:$0xff] %v759
        %858 = vst [vmem:[%s229 + $0x80] sm:$0xff] %v764
        %859 = vst [vmem:[%s229 + $0x88] sm:$0xff] %v769
        %860 = vst [vmem:[%s229 + $0x90] sm:$0xff] %v774
        %861 = vst [vmem:[%s229 + $0x98] sm:$0xff] %v779
        %862 = vst [vmem:[%s229 + $0xa0] sm:$0xff] %v784
        %863 = vst [vmem:[%s229 + $0xa8] sm:$0xff] %v789
        %864 = vst [vmem:[%s229 + $0xb0] sm:$0xff] %v794
        %865 = vst [vmem:[%s229 + $0xb8] sm:$0xff] %v799
        %866 = vst [vmem:[%s229 + $0xc0] sm:$0xff] %v804
        %867 = vst [vmem:[%s229 + $0xc8] sm:$0xff] %v809
        %868 = vst [vmem:[%s229 + $0xd0] sm:$0xff] %v814
        %869 = vst [vmem:[%s229 + $0xd8] sm:$0xff] %v819
        %870 = vst [vmem:[%s229 + $0xe0] sm:$0xff] %v824
        %871 = vst [vmem:[%s229 + $0xe8] sm:$0xff] %v829
        %872 = vst [vmem:[%s229 + $0xf0] sm:$0xff] %v834
        %873 = vst [vmem:[%s229 + $0xf8] sm:$0xff] %v839
        %v874 = vpack.c.bf16 %v448, %v443
        %v875 = vpack.c.bf16 %v458, %v453
        %v876 = vpack.c.bf16 %v468, %v463
        %v877 = vpack.c.bf16 %v478, %v473
        %v878 = vpack.c.bf16 %v488, %v483
        %v879 = vpack.c.bf16 %v498, %v493
        %v880 = vpack.c.bf16 %v508, %v503
        %v881 = vpack.c.bf16 %v518, %v513
        %v882 = vpack.c.bf16 %v528, %v523
        %v883 = vpack.c.bf16 %v538, %v533
        %v884 = vpack.c.bf16 %v548, %v543
        %v885 = vpack.c.bf16 %v558, %v553
        %v886 = vpack.c.bf16 %v568, %v563
        %v887 = vpack.c.bf16 %v578, %v573
        %v888 = vpack.c.bf16 %v588, %v583
        %v889 = vpack.c.bf16 %v598, %v593
        %v906 = vunpack.c.l.b16 %v874
        %v907 = vunpack.c.h.b16 %v874
        %v908 = vunpack.c.l.b16 %v875
        %v909 = vunpack.c.h.b16 %v875
        %v910 = vunpack.c.l.b16 %v876
        %v911 = vunpack.c.h.b16 %v876
        %v912 = vunpack.c.l.b16 %v877
        %v913 = vunpack.c.h.b16 %v877
        %v914 = vunpack.c.l.b16 %v878
        %v915 = vunpack.c.h.b16 %v878
        %v916 = vunpack.c.l.b16 %v879
        %v917 = vunpack.c.h.b16 %v879
        %v918 = vunpack.c.l.b16 %v880
        %v919 = vunpack.c.h.b16 %v880
        %v920 = vunpack.c.l.b16 %v881
        %v921 = vunpack.c.h.b16 %v881
        %v922 = vunpack.c.l.b16 %v882
        %v923 = vunpack.c.h.b16 %v882
        %v924 = vunpack.c.l.b16 %v883
        %v925 = vunpack.c.h.b16 %v883
        %v926 = vunpack.c.l.b16 %v884
        %v927 = vunpack.c.h.b16 %v884
        %v928 = vunpack.c.l.b16 %v885
        %v929 = vunpack.c.h.b16 %v885
        %v930 = vunpack.c.l.b16 %v886
        %v931 = vunpack.c.h.b16 %v886
        %v932 = vunpack.c.l.b16 %v887
        %v933 = vunpack.c.h.b16 %v887
        %v934 = vunpack.c.l.b16 %v888
        %v935 = vunpack.c.h.b16 %v888
        %v936 = vunpack.c.l.b16 %v889
        %v937 = vunpack.c.h.b16 %v889
        %v938 = vpack.c.b16 %v906, %v906
        %v939 = vpack.c.b16 %v907, %v907
        %v940 = vpack.c.b16 %v908, %v908
        %v941 = vpack.c.b16 %v909, %v909
        %v942 = vpack.c.b16 %v910, %v910
        %v943 = vpack.c.b16 %v911, %v911
        %v944 = vpack.c.b16 %v912, %v912
        %v945 = vpack.c.b16 %v913, %v913
        %v946 = vpack.c.b16 %v914, %v914
        %v947 = vpack.c.b16 %v915, %v915
        %v948 = vpack.c.b16 %v916, %v916
        %v949 = vpack.c.b16 %v917, %v917
        %v950 = vpack.c.b16 %v918, %v918
        %v951 = vpack.c.b16 %v919, %v919
        %v952 = vpack.c.b16 %v920, %v920
        %v953 = vpack.c.b16 %v921, %v921
        %v954 = vpack.c.b16 %v922, %v922
        %v955 = vpack.c.b16 %v923, %v923
        %v956 = vpack.c.b16 %v924, %v924
        %v957 = vpack.c.b16 %v925, %v925
        %v958 = vpack.c.b16 %v926, %v926
        %v959 = vpack.c.b16 %v927, %v927
        %v960 = vpack.c.b16 %v928, %v928
        %v961 = vpack.c.b16 %v929, %v929
        %v962 = vpack.c.b16 %v930, %v930
        %v963 = vpack.c.b16 %v931, %v931
        %v964 = vpack.c.b16 %v932, %v932
        %v965 = vpack.c.b16 %v933, %v933
        %v966 = vpack.c.b16 %v934, %v934
        %v967 = vpack.c.b16 %v935, %v935
        %v968 = vpack.c.b16 %v936, %v936
        %v969 = vpack.c.b16 %v937, %v937
        %1002 = vst [vmem:[%s222] sm:$0xf] %v938
        %1003 = vst [vmem:[%s222 + $0x4] sm:$0xf] %v939
        %1004 = vst [vmem:[%s222 + $0x8] sm:$0xf] %v940
        %1005 = vst [vmem:[%s222 + $0xc] sm:$0xf] %v941
        %1006 = vst [vmem:[%s222 + $0x10] sm:$0xf] %v942
        %1007 = vst [vmem:[%s222 + $0x14] sm:$0xf] %v943
        %1008 = vst [vmem:[%s222 + $0x18] sm:$0xf] %v944
        %1009 = vst [vmem:[%s222 + $0x1c] sm:$0xf] %v945
        %1010 = vst [vmem:[%s222 + $0x20] sm:$0xf] %v946
        %1011 = vst [vmem:[%s222 + $0x24] sm:$0xf] %v947
        %1012 = vst [vmem:[%s222 + $0x28] sm:$0xf] %v948
        %1013 = vst [vmem:[%s222 + $0x2c] sm:$0xf] %v949
        %1014 = vst [vmem:[%s222 + $0x30] sm:$0xf] %v950
        %1015 = vst [vmem:[%s222 + $0x34] sm:$0xf] %v951
        %1016 = vst [vmem:[%s222 + $0x38] sm:$0xf] %v952
        %1017 = vst [vmem:[%s222 + $0x3c] sm:$0xf] %v953
        %1018 = vst [vmem:[%s222 + $0x40] sm:$0xf] %v954
        %1019 = vst [vmem:[%s222 + $0x44] sm:$0xf] %v955
        %1020 = vst [vmem:[%s222 + $0x48] sm:$0xf] %v956
        %1021 = vst [vmem:[%s222 + $0x4c] sm:$0xf] %v957
        %1022 = vst [vmem:[%s222 + $0x50] sm:$0xf] %v958
        %1023 = vst [vmem:[%s222 + $0x54] sm:$0xf] %v959
        %1024 = vst [vmem:[%s222 + $0x58] sm:$0xf] %v960
        %1025 = vst [vmem:[%s222 + $0x5c] sm:$0xf] %v961
        %1026 = vst [vmem:[%s222 + $0x60] sm:$0xf] %v962
        %1027 = vst [vmem:[%s222 + $0x64] sm:$0xf] %v963
        %1028 = vst [vmem:[%s222 + $0x68] sm:$0xf] %v964
        %1029 = vst [vmem:[%s222 + $0x6c] sm:$0xf] %v965
        %1030 = vst [vmem:[%s222 + $0x70] sm:$0xf] %v966
        %1031 = vst [vmem:[%s222 + $0x74] sm:$0xf] %v967
        %1032 = vst [vmem:[%s222 + $0x78] sm:$0xf] %v968
        %1033 = vst [vmem:[%s222 + $0x7c] sm:$0xf] %v969
        %s1034 = sand.u32 %s120, 1
        %s1035 = scalar_lea.sflag [#allocation3], %s1034
        %s1036 = sand.u32 %s120, 1
        %s1037 = smul.addr %s1036, 128
        %s1038 = scalar_lea.vmem [#allocation2], %s1037
        %s1039 = sand.u32 %s146, 1
        %s1040 = scalar_lea.sflag [#allocation5], %s1039
        %s1041 = sand.u32 %s146, 1
        %s1042 = smul.addr %s1041, 256
        %s1043 = scalar_lea.vmem [#allocation4], %s1042
        // Predicated region
        $region37: #{tpu_custom_call.1} parent=35 // pred_check
          %p1044 = pneg %p130
        $region38: #{tpu_custom_call.1} parent=35 // pred_check_branch
          %1046 = sbr.rel (%p1044) target = $region40
        $region39: #{tpu_custom_call.1} parent=35 // pred_region
          %s1047 = smul.u32 32, %s23
          %s1049 = ssub.s32 2048, 2048
          %1050 = vsyncadd %s1035, %s1049
          %s1051 = smul.addr %s1047, 64
          %s1052 = scalar_lea.hbm %s4, %s1051
          %s1053 = sshll.u32 %s1038, 4
          %s1054 = int_to_ptr.vmem [resolvable:$true] %s1053
          %1059 = dma.vmem_to_hbm [thread:$0]  %s1054, 2048, %s1052, %s1035, 64, 64, 4
        $region40: #{tpu_custom_call.1} parent=35 // pred_fallthru
          _
        // Predicated region
        $region41: #{tpu_custom_call.1} parent=35 // pred_check
          %p1060 = pneg %p156
        $region42: #{tpu_custom_call.1} parent=35 // pred_check_branch
          %1062 = sbr.rel (%p1060) target = $region44
        $region43: #{tpu_custom_call.1} parent=35 // pred_region
          %s1063 = smul.u32 32, %s23
          %s1065 = ssub.s32 4096, 4096
          %1066 = vsyncadd %s1040, %s1065
          %s1067 = smul.addr %s1063, 128
          %s1068 = scalar_lea.hbm %s5, %s1067
          %s1069 = sshll.u32 %s1043, 4
          %s1070 = int_to_ptr.vmem [resolvable:$true] %s1069
          %1075 = dma.vmem_to_hbm [thread:$0]  %s1070, 4096, %s1068, %s1040, 128, 128, 8
        $region44: #{tpu_custom_call.1} parent=35 // pred_fallthru
          _
      $region36: #{tpu_custom_call.1} parent=5 // pred_fallthru
        _
      %p1076 = scmp.le.s32.totalorder 2, %s18
      // Predicated region
      $region45: #{tpu_custom_call.1} parent=5 // pred_check
        %p1077 = pneg %p1076
      $region46: #{tpu_custom_call.1} parent=5 // pred_check_branch
        %1079 = sbr.rel (%p1077) target = $region48
      $region47: #{tpu_custom_call.1} parent=5 // pred_region
        %s1080 = ssub.s32 %s18, 2
        // Predicated region
        $region49: #{tpu_custom_call.1} parent=47 // pred_check
          %p1081 = pneg %p136
        $region50: #{tpu_custom_call.1} parent=47 // pred_check_branch
          %1083 = sbr.rel (%p1081) target = $region52
        $region51: #{tpu_custom_call.1} parent=47 // pred_region
          %s1084 = sand.u32 %s121, 1
          %s1085 = scalar_lea.sflag [#allocation3], %s1084
          %s1086 = sand.u32 %s121, 1
          %s1087 = smul.addr %s1086, 128
          %s1088 = scalar_lea.vmem [#allocation2], %s1087
          %1089 = dma.done %s1085, 2048
        $region52: #{tpu_custom_call.1} parent=47 // pred_fallthru
          _
        // Predicated region
        $region53: #{tpu_custom_call.1} parent=47 // pred_check
          %p1090 = pneg %p162
        $region54: #{tpu_custom_call.1} parent=47 // pred_check_branch
          %1092 = sbr.rel (%p1090) target = $region56
        $region55: #{tpu_custom_call.1} parent=47 // pred_region
          %s1093 = sand.u32 %s147, 1
          %s1094 = scalar_lea.sflag [#allocation5], %s1093
          %s1095 = sand.u32 %s147, 1
          %s1096 = smul.addr %s1095, 256
          %s1097 = scalar_lea.vmem [#allocation4], %s1096
          %1098 = dma.done %s1094, 4096
        $region56: #{tpu_custom_call.1} parent=47 // pred_fallthru
          _
      $region48: #{tpu_custom_call.1} parent=5 // pred_fallthru
        _
    $region6: #{tpu_custom_call.1} parent=1 // loop_footer
      %s22 = sadd.s32 1, %s18
    $region7: #{tpu_custom_call.1} parent=1 // loop_footer_branch
      %17 = sbr.rel target = $region3
    $region8: #{tpu_custom_call.1} parent=1 // loop_exit
      _
    %1099 = vsyncpa [#allocation3], 1
    %s1100 = scalar_lea.sflag [#allocation3], 1
    %1101 = vsyncpa %s1100, 1
    %1102 = vsyncpa [#allocation5], 1
    %s1103 = scalar_lea.sflag [#allocation5], 1
    %1104 = vsyncpa %s1103, 1

</llo_original>
